<compile_context>
chip_gen: v7x
topology: tpu7x:2x2x1
jax: 0.10.0
libtpu: 0.0.40
codegen_flags: <defaults>
</compile_context>

<pallas_src>
import functools

import jax
import jax.numpy as jnp
from jax.experimental import pallas as pl
from jax.experimental.pallas import tpu as pltpu


def _round_up(x, m):
    return (x + m - 1) // m * m


def _pick_tile(dim, preferred):
    """Largest multiple-of-128 divisor of `dim` that is <= `preferred`.
    `dim` is always a multiple of 128 here, so 128 is a guaranteed fallback."""
    if dim <= preferred:
        return dim
    start = preferred - preferred % 128
    for t in range(start, 127, -128):
        if dim % t == 0:
            return t
    return 128


def _mlp_kernel(x_ref, w1_ref, b1_ref, w2_ref, b2_ref, o_ref, h_ref, acc_ref):
    """Grid = (i over M tiles, j over d_out tiles, k over d_hid tiles).

    fc1 for the k-th hidden tile is computed once per row tile (at j == 0) and
    cached in the persistent VMEM scratch h_ref; every j reuses it for the fc2
    partial, which is accumulated over k in the f32 scratch acc_ref.
    """
    j = pl.program_id(1)
    k = pl.program_id(2)

    @pl.when(j == 0)
    def _():
        # fc1 partial over this hidden tile: (tm, d_in) @ (d_in, tk) + b1 tile
        h = jnp.dot(x_ref[...], w1_ref[...], preferred_element_type=jnp.float32)
        h = jnp.maximum(h + b1_ref[...], 0.0)          # bias + ReLU (VPU)
        # Dropout(p=0.0) is the identity -> nothing to materialize.
        h_ref[k] = h.astype(h_ref.dtype)               # cache for j > 0

    @pl.when(k == 0)
    def _():
        acc_ref[...] = jnp.zeros_like(acc_ref)

    # fc2 partial, accumulated over the hidden (reduction) axis.
    acc_ref[...] += jnp.dot(h_ref[k], w2_ref[...],
                            preferred_element_type=jnp.float32)

    @pl.when(k == pl.num_programs(2) - 1)
    def _():
        o_ref[...] = (acc_ref[...] + b2_ref[...]).astype(o_ref.dtype)


def _vmem_budget_bytes():
    """Generation-aware VMEM budget (v5e/v6e: 128 MiB, v7x: 64 MiB per TC)."""
    cap = 64 * 1024 * 1024
    try:
        c = int(pltpu.get_tpu_info().vmem_capacity_bytes)
        if c > 0:
            cap = c
    except Exception:
        pass
    return max(32 * 1024 * 1024, min(int(cap * 0.8), cap - 8 * 1024 * 1024))


def _vmem_bytes(tm, tn, tk, d_in, d_hid_pad, x_it, w_it, o_it):
    """Double-buffered pipeline blocks + scratch, in bytes."""
    return (2 * tm * d_in * x_it            # x row tiles
            + 2 * d_in * tk * w_it          # W1 k-tiles
            + 2 * tk * w_it                 # b1 k-tiles
            + 2 * tk * tn * w_it            # W2 (k, j) tiles
            + 2 * tn * w_it                 # b2 j-tiles
            + 2 * tm * tn * o_it            # output tiles
            + tm * tn * 4                   # f32 accumulator scratch
            + tm * d_hid_pad * w_it)        # cached fc1 activations


@functools.partial(jax.jit, static_argnames=("tm", "tn", "tk", "compute_dtype"))
def mlp_pallas(x, w1, b1, w2, b2, *, tm=None, tn=256, tk=256, compute_dtype=None):
    """x: (B, S, d_in) -> (B, S, d_out). Fused Linear -> ReLU -> Linear."""
    orig_dtype = x.dtype
    B, S, d_in = x.shape
    d_hid = w1.shape[1]
    d_out = w2.shape[1]
    M = B * S

    # Optional bf16 compute path (MXU-native, halves weight DMA). Accumulation
    # stays f32 either way; default keeps the caller's dtype for exactness.
    if compute_dtype is not None:
        x = x.astype(compute_dtype)
        w1, b1 = w1.astype(compute_dtype), b1.astype(compute_dtype)
        w2, b2 = w2.astype(compute_dtype), b2.astype(compute_dtype)

    # Pad hidden / output feature dims to multiples of 128 (lane-dense, bounded
    # tiles).  Zero padding is exact: relu(0 + 0) = 0 contributes nothing to
    # fc2, and padded output columns are sliced off below.
    d_hid_pad = _round_up(d_hid, 128)
    d_out_pad = _round_up(d_out, 128)
    if d_hid_pad != d_hid:
        w1 = jnp.pad(w1, ((0, 0), (0, d_hid_pad - d_hid)))
        b1 = jnp.pad(b1, (0, d_hid_pad - d_hid))
        w2 = jnp.pad(w2, ((0, d_hid_pad - d_hid), (0, 0)))
    if d_out_pad != d_out:
        w2 = jnp.pad(w2, ((0, 0), (0, d_out_pad - d_out)))
        b2 = jnp.pad(b2, (0, d_out_pad - d_out))

    # No row padding of x: the i grid uses pl.cdiv; the ragged last row tile's
    # OOB reads are row-local (cannot corrupt valid rows) and its OOB output
    # writes are discarded, so no extra HBM round trip over activations.
    x2 = x.reshape(M, d_in)
    b1_2 = b1.reshape(1, d_hid_pad)
    b2_2 = b2.reshape(1, d_out_pad)

    x_it = x2.dtype.itemsize
    w_it = w2.dtype.itemsize
    o_it = orig_dtype.itemsize

    # --- tile selection under the generation-aware VMEM budget ---------------
    budget = _vmem_budget_bytes()
    M_cap = _round_up(M, 8)
    tm_eff = min(512, M_cap) if tm is None else min(tm, M_cap)
    tm_eff = _round_up(tm_eff, 8)
    tn_eff = _pick_tile(d_out_pad, max(128, tn))
    tk_eff = _pick_tile(d_hid_pad, max(128, tk))

    def fits(tm_c, tn_c, tk_c):
        return _vmem_bytes(tm_c, tn_c, tk_c, d_in, d_hid_pad,
                           x_it, w_it, o_it) <= budget

    # Shrink tiles until the double-buffered working set fits (large d_in /
    # d_hid cases; keeps v7x's 64 MiB per-TC VMEM happy without tiny tiles).
    while not fits(tm_eff, tn_eff, tk_eff):
        if tm_eff > 128:
            tm_eff = max(128, _round_up(tm_eff // 2, 8))
        elif tk_eff > 128:
            tk_eff = _pick_tile(d_hid_pad, max(128, tk_eff // 2))
        elif tn_eff > 128:
            tn_eff = _pick_tile(d_out_pad, max(128, tn_eff // 2))
        elif tm_eff > 8:
            tm_eff = max(8, _round_up(tm_eff // 2, 8))
        else:
            break

    it = pl.cdiv(M, tm_eff)
    jt = d_out_pad // tn_eff
    kt = d_hid_pad // tk_eff
    last_k = kt - 1
    grid = (it, jt, kt)

    # W1 / b1 are only consumed at j == 0; pin their block index to the last k
    # block for j > 0 so consecutive steps keep the same index and Pallas skips
    # the redundant re-DMA of the fc1 weights.
    def w1_map(i, j, k):
        return (0, jnp.where(j == 0, k, last_k))

    # Honest cost estimate: fc1 computed once per token, weights streamed once
    # per row tile.
    flops = 2 * M * (d_in * d_hid_pad + d_hid_pad * d_out_pad)
    bytes_accessed = (
        M * d_in * x_it
        + it * (d_in * d_hid_pad + d_hid_pad + d_hid_pad * d_out_pad + d_out_pad) * w_it
        + M * d_out_pad * o_it)

    out2 = pl.pallas_call(
        _mlp_kernel,
        out_shape=jax.ShapeDtypeStruct((M, d_out_pad), orig_dtype),
        grid_spec=pltpu.PrefetchScalarGridSpec(
            num_scalar_prefetch=0,
            grid=grid,
            in_specs=[
                pl.BlockSpec((tm_eff, d_in), lambda i, j, k: (i, 0)),     # x rows
                pl.BlockSpec((d_in, tk_eff), w1_map),                     # W1 k-tile
                pl.BlockSpec((1, tk_eff), w1_map),                        # b1 k-tile
                pl.BlockSpec((tk_eff, tn_eff), lambda i, j, k: (k, j)),   # W2 tile
                pl.BlockSpec((1, tn_eff), lambda i, j, k: (0, j)),        # b2 j-tile
            ],
            out_specs=pl.BlockSpec((tm_eff, tn_eff), lambda i, j, k: (i, j)),
            scratch_shapes=[
                pltpu.VMEM((kt, tm_eff, tk_eff), w2.dtype),   # cached fc1 act
                pltpu.VMEM((tm_eff, tn_eff), jnp.float32),    # fc2 accumulator
            ],
        ),
        compiler_params=pltpu.CompilerParams(
            # Only the M axis is core-parallel: j > 0 reuses the per-core h
            # cache written at j == 0, and k is the fc2 reduction.
            dimension_semantics=("parallel", "arbitrary", "arbitrary"),
            vmem_limit_bytes=budget,
        ),
        cost_estimate=pl.CostEstimate(
            flops=flops, transcendentals=0, bytes_accessed=bytes_accessed),
    )(x2, w1, b1_2, w2, b2_2)

    if d_out_pad != d_out:
        out2 = out2[:, :d_out]
    return out2.reshape(B, S, d_out)


def _init_params(key, in_features, hidden_features=None, out_features=None,
                 dtype=jnp.float32):
    """nn.Linear-style U(-1/sqrt(fan_in), 1/sqrt(fan_in)) init; weights stored
    already transposed ((in, hidden), (hidden, out)) so the kernel does x @ W."""
    out_features = out_features or in_features
    hidden_features = hidden_features or in_features // 4
    k1, k2, k3, k4 = jax.random.split(key, 4)
    lim1 = 1.0 / (in_features ** 0.5)
    lim2 = 1.0 / (hidden_features ** 0.5)
    w1 = jax.random.uniform(k1, (in_features, hidden_features), dtype, -lim1, lim1)
    b1 = jax.random.uniform(k2, (hidden_features,), dtype, -lim1, lim1)
    w2 = jax.random.uniform(k3, (hidden_features, out_features), dtype, -lim2, lim2)
    b2 = jax.random.uniform(k4, (out_features,), dtype, -lim2, lim2)
    return w1, b1, w2, b2


def _mlp_ref(x, w1, b1, w2, b2):
    h = jnp.maximum(x @ w1 + b1, 0.0)
    return h @ w2 + b2


if __name__ == "__main__":
    key = jax.random.PRNGKey(0)
    k1, k2, k3, k4, k5, k6 = jax.random.split(key, 6)

    # 1) Shapes implied by the module defaults: MLP(32) -> hidden 8, out 32.
    x = jax.random.normal(k1, (2, 8, 32), jnp.float32)
    p = _init_params(k2, 32)
    out = jax.block_until_ready(mlp_pallas(x, *p))
    ref = _mlp_ref(x, *p)
    assert out.shape == (2, 8, 32)
    assert jnp.allclose(out, ref, atol=1e-5, rtol=1e-5), "case-1 mismatch"

    # 2) Ragged M (B*S = 400) with 128-divisible feature dims.
    x2 = jax.random.normal(k3, (2, 200, 128), jnp.float32)
    p2 = _init_params(k4, 128, 32, 128)
    out2 = jax.block_until_ready(mlp_pallas(x2, *p2))
    ref2 = _mlp_ref(x2, *p2)
    assert out2.shape == (2, 200, 128)
    assert jnp.allclose(out2, ref2, atol=1e-4, rtol=1e-4), "case-2 mismatch"

    # 3) Multi-tile grid (2 row tiles x 3 d_out tiles x 2 d_hid tiles):
    #    exercises the cached-fc1 reuse across j, the pinned W1 index map, the
    #    k-axis accumulator, the ragged last row tile and d_out padding/slicing.
    x3 = jax.random.normal(k5, (2, 100, 96), jnp.float32)
    p3 = _init_params(k6, 96, 200, 320)
    out3 = jax.block_until_ready(mlp_pallas(x3, *p3, tm=128, tn=128, tk=128))
    ref3 = _mlp_ref(x3, *p3)
    assert out3.shape == (2, 100, 320)
    assert jnp.allclose(out3, ref3, atol=1e-4, rtol=1e-4), "case-3 mismatch"

    print("KERNEL_OK")
</pallas_src>

<mosaic_0001>
module attributes {stable_mosaic.version = 11 : i64} {
  func.func @_mlp_kernel(%arg0: i32, %arg1: i32, %arg2: i32, %arg3: memref<16x32xf32, #tpu.memory_space<vmem>>, %arg4: memref<32x128xf32, #tpu.memory_space<vmem>>, %arg5: memref<1x128xf32, #tpu.memory_space<vmem>>, %arg6: memref<128x128xf32, #tpu.memory_space<vmem>>, %arg7: memref<1x128xf32, #tpu.memory_space<vmem>>, %arg8: memref<16x128xf32, #tpu.memory_space<vmem>>, %arg9: memref<1x16x128xf32, #tpu.memory_space<vmem>>, %arg10: memref<16x128xf32, #tpu.memory_space<vmem>>) attributes {dimension_semantics = [#tpu.dimension_semantics<parallel>, #tpu.dimension_semantics<arbitrary>, #tpu.dimension_semantics<arbitrary>], iteration_bounds = array<i64: 1, 1, 1>, scalar_prefetch = 0 : i64, scratch_operands = 2 : i64, tpu.core_type = #tpu.core_type<tc>, window_params = [{transform_indices = @transform_0, window_bounds = array<i64: 16, 32>}, {transform_indices = @transform_1, window_bounds = array<i64: 32, 128>}, {transform_indices = @transform_2, window_bounds = array<i64: 1, 128>}, {transform_indices = @transform_3, window_bounds = array<i64: 128, 128>}, {transform_indices = @transform_4, window_bounds = array<i64: 1, 128>}, {transform_indices = @transform_5, window_bounds = array<i64: 16, 128>}]} {
    %c0_i32 = arith.constant 0 : i32
    %0 = arith.cmpi eq, %arg1, %c0_i32 : i32
    %1 = arith.extui %0 : i1 to i32
    %c0_i32_0 = arith.constant 0 : i32
    %2 = arith.cmpi ne, %1, %c0_i32_0 : i32
    scf.if %2 {
      %c0_12 = arith.constant 0 : index
      %c0_13 = arith.constant 0 : index
      %17 = vector.load %arg3[%c0_12, %c0_13] : memref<16x32xf32, #tpu.memory_space<vmem>>, vector<16x32xf32>
      %c0_14 = arith.constant 0 : index
      %c0_15 = arith.constant 0 : index
      %18 = vector.load %arg4[%c0_14, %c0_15] : memref<32x128xf32, #tpu.memory_space<vmem>>, vector<32x128xf32>
      %cst_16 = arith.constant dense<0.000000e+00> : vector<16x128xf32>
      %19 = tpu.matmul %17, %18, %cst_16 {dimension_numbers = #tpu.dot_dimension_numbers<[1], [0], [0], [1], [0, 0, 1, 1], [], []>} : vector<16x32xf32>, vector<32x128xf32>, vector<16x128xf32> -> vector<16x128xf32>
      %c0_17 = arith.constant 0 : index
      %c0_18 = arith.constant 0 : index
      %20 = vector.load %arg5[%c0_17, %c0_18] : memref<1x128xf32, #tpu.memory_space<vmem>>, vector<1x128xf32>
      %21 = vector.broadcast %20 : vector<1x128xf32> to vector<16x128xf32>
      %22 = arith.addf %19, %21 : vector<16x128xf32>
      %cst_19 = arith.constant 0.000000e+00 : f32
      %23 = vector.broadcast %cst_19 : f32 to vector<16x128xf32>
      %24 = arith.maximumf %22, %23 : vector<16x128xf32>
      %25 = arith.index_cast %arg2 : i32 to index
      %c0_20 = arith.constant 0 : index
      %c0_21 = arith.constant 0 : index
      %26 = vector.load %arg9[%25, %c0_20, %c0_21] : memref<1x16x128xf32, #tpu.memory_space<vmem>>, vector<1x16x128xf32>
      %27 = vector.shape_cast %26 : vector<1x16x128xf32> to vector<16x128xf32>
      %28 = vector.shape_cast %24 : vector<16x128xf32> to vector<1x16x128xf32>
      tpu.vector_store %arg9[%25, %c0_20, %c0_21], %28 {strides = array<i32>} : memref<1x16x128xf32, #tpu.memory_space<vmem>>, vector<1x16x128xf32>,
    } else {
    }
    %c0_i32_1 = arith.constant 0 : i32
    %3 = arith.cmpi eq, %arg2, %c0_i32_1 : i32
    %4 = arith.extui %3 : i1 to i32
    %c0_i32_2 = arith.constant 0 : i32
    %5 = arith.cmpi ne, %4, %c0_i32_2 : i32
    scf.if %5 {
      %cst_12 = arith.constant 0.000000e+00 : f32
      %17 = vector.broadcast %cst_12 : f32 to vector<16x128xf32>
      %c0_13 = arith.constant 0 : index
      %c0_14 = arith.constant 0 : index
      %18 = vector.load %arg10[%c0_13, %c0_14] : memref<16x128xf32, #tpu.memory_space<vmem>>, vector<16x128xf32>
      tpu.vector_store %arg10[%c0_13, %c0_14], %17 {strides = array<i32>} : memref<16x128xf32, #tpu.memory_space<vmem>>, vector<16x128xf32>,
    } else {
    }
    %c0 = arith.constant 0 : index
    %c0_3 = arith.constant 0 : index
    %6 = vector.load %arg10[%c0, %c0_3] : memref<16x128xf32, #tpu.memory_space<vmem>>, vector<16x128xf32>
    %7 = arith.index_cast %arg2 : i32 to index
    %c0_4 = arith.constant 0 : index
    %c0_5 = arith.constant 0 : index
    %8 = vector.load %arg9[%7, %c0_4, %c0_5] : memref<1x16x128xf32, #tpu.memory_space<vmem>>, vector<1x16x128xf32>
    %9 = vector.shape_cast %8 : vector<1x16x128xf32> to vector<16x128xf32>
    %c0_6 = arith.constant 0 : index
    %c0_7 = arith.constant 0 : index
    %10 = vector.load %arg6[%c0_6, %c0_7] : memref<128x128xf32, #tpu.memory_space<vmem>>, vector<128x128xf32>
    %cst = arith.constant dense<0.000000e+00> : vector<16x128xf32>
    %11 = tpu.matmul %9, %10, %cst {dimension_numbers = #tpu.dot_dimension_numbers<[1], [0], [0], [1], [0, 0, 1, 1], [], []>} : vector<16x128xf32>, vector<128x128xf32>, vector<16x128xf32> -> vector<16x128xf32>
    %12 = arith.addf %6, %11 : vector<16x128xf32>
    %c0_8 = arith.constant 0 : index
    %c0_9 = arith.constant 0 : index
    %13 = vector.load %arg10[%c0_8, %c0_9] : memref<16x128xf32, #tpu.memory_space<vmem>>, vector<16x128xf32>
    tpu.vector_store %arg10[%c0_8, %c0_9], %12 {strides = array<i32>} : memref<16x128xf32, #tpu.memory_space<vmem>>, vector<16x128xf32>,
    %c0_i32_10 = arith.constant 0 : i32
    %14 = arith.cmpi eq, %arg2, %c0_i32_10 : i32
    %15 = arith.extui %14 : i1 to i32
    %c0_i32_11 = arith.constant 0 : i32
    %16 = arith.cmpi ne, %15, %c0_i32_11 : i32
    scf.if %16 {
      %c0_12 = arith.constant 0 : index
      %c0_13 = arith.constant 0 : index
      %17 = vector.load %arg10[%c0_12, %c0_13] : memref<16x128xf32, #tpu.memory_space<vmem>>, vector<16x128xf32>
      %c0_14 = arith.constant 0 : index
      %c0_15 = arith.constant 0 : index
      %18 = vector.load %arg7[%c0_14, %c0_15] : memref<1x128xf32, #tpu.memory_space<vmem>>, vector<1x128xf32>
      %19 = vector.broadcast %18 : vector<1x128xf32> to vector<16x128xf32>
      %20 = arith.addf %17, %19 : vector<16x128xf32>
      %c0_16 = arith.constant 0 : index
      %c0_17 = arith.constant 0 : index
      %21 = vector.load %arg8[%c0_16, %c0_17] : memref<16x128xf32, #tpu.memory_space<vmem>>, vector<16x128xf32>
      tpu.vector_store %arg8[%c0_16, %c0_17], %20 {strides = array<i32>} : memref<16x128xf32, #tpu.memory_space<vmem>>, vector<16x128xf32>,
    } else {
    }
    return
  }
  func.func @transform_0(%arg0: i32, %arg1: i32, %arg2: i32) -> (i32, i32) {
    %c0_i32 = arith.constant 0 : i32
    %c0_i32_0 = arith.constant 0 : i32
    return %arg0, %c0_i32 : i32, i32
  }
  func.func @transform_1(%arg0: i32, %arg1: i32, %arg2: i32) -> (i32, i32) {
    %c0_i32 = arith.constant 0 : i32
    %0 = arith.cmpi eq, %arg1, %c0_i32 : i32
    %c0_i32_0 = arith.constant 0 : i32
    %1 = arith.select %0, %arg2, %c0_i32_0 : i32
    %c0_i32_1 = arith.constant 0 : i32
    %c0_i32_2 = arith.constant 0 : i32
    return %c0_i32_1, %1 : i32, i32
  }
  func.func @transform_2(%arg0: i32, %arg1: i32, %arg2: i32) -> (i32, i32) {
    %c0_i32 = arith.constant 0 : i32
    %0 = arith.cmpi eq, %arg1, %c0_i32 : i32
    %c0_i32_0 = arith.constant 0 : i32
    %1 = arith.select %0, %arg2, %c0_i32_0 : i32
    %c0_i32_1 = arith.constant 0 : i32
    %c0_i32_2 = arith.constant 0 : i32
    return %c0_i32_1, %1 : i32, i32
  }
  func.func @transform_3(%arg0: i32, %arg1: i32, %arg2: i32) -> (i32, i32) {
    %c0_i32 = arith.constant 0 : i32
    return %arg2, %arg1 : i32, i32
  }
  func.func @transform_4(%arg0: i32, %arg1: i32, %arg2: i32) -> (i32, i32) {
    %c0_i32 = arith.constant 0 : i32
    %c0_i32_0 = arith.constant 0 : i32
    return %c0_i32, %arg1 : i32, i32
  }
  func.func @transform_5(%arg0: i32, %arg1: i32, %arg2: i32) -> (i32, i32) {
    %c0_i32 = arith.constant 0 : i32
    return %arg0, %arg1 : i32, i32
  }
}

</mosaic_0001>

<llo_original>
// kernel: mlp_pallas.1
$region0: #{mlp_pallas.1}
  #allocation0 [shape = 'u32[]', space=smem, size = 0x4, offset = 0x4, fixed_abs, tag = 'smem constant byte address 0x4 - core index']
  #allocation1 [shape = 'u32[144,128]{1,0:T(1,128)}', space=vmem, size = 0x12000, scoped, tag = 'internal scratch']
  #allocation2 [shape = 'f32[1,16,128]{2,1,0:T(8,128)}', space=vmem, size = 0x2000, scoped, tag = 'scratch operand']
  #allocation3 [shape = 'f32[16,128]{1,0:T(8,128)}', space=vmem, size = 0x2000, scoped, tag = 'scratch operand']
  %s0 = inlined_call_operand.vmem [shape: f32[16,32], index: 0, kind: input, shape index: {}]
  %s1 = inlined_call_operand.vmem [shape: f32[32,128], index: 1, kind: input, shape index: {}]
  %s2 = inlined_call_operand.vmem [shape: f32[1,128], index: 2, kind: input, shape index: {}]
  %s3 = inlined_call_operand.vmem [shape: f32[128,128], index: 3, kind: input, shape index: {}]
  %s4 = inlined_call_operand.vmem [shape: f32[1,128], index: 4, kind: input, shape index: {}]
  %s5 = inlined_call_operand.vmem [shape: f32[16,128], index: 5, kind: output, shape index: {}]
  %s6 = sld [smem:[#allocation0]]
  $region42: #{mlp_pallas.1} parent=0
    _
  %s8 = ssub.s32 1, %s6
  %s9 = scalar_select 0, %s8, %s6
  // Predicated region
  $region2: #{mlp_pallas.1} parent=0 // pred_check
    _
  $region3: #{mlp_pallas.1} parent=0 // pred_check_branch
    %11 = sbr.rel (0) target = $region5
  $region4: #{mlp_pallas.1} parent=0 // pred_region
    _
  $region5: #{mlp_pallas.1} parent=0 // pred_fallthru
    _
  // Predicated region
  $region6: #{mlp_pallas.1} parent=0 // pred_check
    _
  $region7: #{mlp_pallas.1} parent=0 // pred_check_branch
    %13 = sbr.rel (0) target = $region9
  $region8: #{mlp_pallas.1} parent=0 // pred_region
    %p14 = scmp.eq.s32.totalorder 0, 0
    %s15 = scalar_select %p14, 0, 0
    %p16 = scmp.lt.s32.totalorder %s15, 0
    %s17 = scalar_select %p16, %s15, 0
    %s18 = smul.addr %s17, 8
    %s19 = scalar_lea.vmem %s1, %s18
    %p20 = scmp.eq.s32.totalorder 0, 0
    %s21 = scalar_select %p20, 0, 0
  $region9: #{mlp_pallas.1} parent=0 // pred_fallthru
    _
  // Predicated region
  $region10: #{mlp_pallas.1} parent=0 // pred_check
    _
  $region11: #{mlp_pallas.1} parent=0 // pred_check_branch
    %23 = sbr.rel (0) target = $region13
  $region12: #{mlp_pallas.1} parent=0 // pred_region
    %p24 = scmp.eq.s32.totalorder 0, 0
    %s25 = scalar_select %p24, 0, 0
    %p26 = scmp.lt.s32.totalorder %s25, 0
    %s27 = scalar_select %p26, %s25, 0
    %s28 = scalar_lea.vmem %s2, %s27
    %p29 = scmp.eq.s32.totalorder 0, 0
    %s30 = scalar_select %p29, 0, 0
  $region13: #{mlp_pallas.1} parent=0 // pred_fallthru
    _
  // Predicated region
  $region14: #{mlp_pallas.1} parent=0 // pred_check
    _
  $region15: #{mlp_pallas.1} parent=0 // pred_check_branch
    %32 = sbr.rel (0) target = $region17
  $region16: #{mlp_pallas.1} parent=0 // pred_region
    _
  $region17: #{mlp_pallas.1} parent=0 // pred_fallthru
    _
  // Predicated region
  $region18: #{mlp_pallas.1} parent=0 // pred_check
    _
  $region19: #{mlp_pallas.1} parent=0 // pred_check_branch
    %34 = sbr.rel (0) target = $region21
  $region20: #{mlp_pallas.1} parent=0 // pred_region
    _
  $region21: #{mlp_pallas.1} parent=0 // pred_fallthru
    _
  %p35 = scmp.eq.s32.totalorder 0, 0
  %s36 = scalar_select %p35, 0, 0
  %p37 = scmp.lt.s32.totalorder %s36, 0
  %s38 = scalar_select %p37, %s36, 0
  %s39 = smul.addr %s38, 8
  %s40 = scalar_lea.vmem %s1, %s39
  %p41 = scmp.eq.s32.totalorder 0, 0
  %s42 = scalar_select %p41, 0, 0
  %p43 = scmp.lt.s32.totalorder %s42, 0
  %s44 = scalar_select %p43, %s42, 0
  %s45 = scalar_lea.vmem %s2, %s44
  %p46 = scmp.eq.s32.totalorder 0, 0
  %s47 = scalar_select %p46, 0, 0
  %p48 = scmp.lt.s32.totalorder %s47, 0
  %s49 = scalar_select %p48, %s47, 0
  %s50 = smul.addr %s49, 8
  %s51 = scalar_lea.vmem %s1, %s50
  %p52 = scmp.eq.s32.totalorder 0, 0
  %s53 = scalar_select %p52, 0, 0
  %p54 = scmp.eq.s32.totalorder 0, 0
  %s55 = scalar_select %p54, 0, 0
  %p56 = scmp.lt.s32.totalorder %s55, 0
  %s57 = scalar_select %p56, %s55, 0
  %s58 = scalar_lea.vmem %s2, %s57
  %p59 = scmp.eq.s32.totalorder 0, 0
  %s60 = scalar_select %p59, 0, 0
  %p61 = scmp.eq.s32.totalorder 0, 0
  // Predicated region
  $region22: #{mlp_pallas.1} parent=0 // pred_check
    %p62 = pneg %p61
  $region23: #{mlp_pallas.1} parent=0 // pred_check_branch
    %64 = sbr.rel (%p62) target = $region25
  $region24: #{mlp_pallas.1} parent=0 // pred_region
    %v65 = vld [vmem:[%s0] sm:$0xff]
    %v66 = vld [vmem:[%s0 + $0x8] sm:$0xff]
    %v67 = vld [vmem:[%s51] sm:$0xff]
    %v68 = vld [vmem:[%s51 + $0x8] sm:$0xff]
    %v69 = vld [vmem:[%s51 + $0x10] sm:$0xff]
    %v70 = vld [vmem:[%s51 + $0x18] sm:$0xff]
    %v71 = vld [vmem:[%s58] sm:$0x1]
    %v73 = vlaneseq
    %v74 = vshrl.u32 %v73, 7
    %v75 = vsub.s32 0, %v74
    %v76 = vrot.slane %v71, %v75
    %vm78 = vcmask 261120
    %v80 = vsel %vm78, %v65, 0
    %v83 = vsel %vm78, %v66, 0
    %85 = vmatprep.subr.mxu0 0.0
    %86 = vmatpush1.msra.mxu0 %v67
    %87 = vmatprep.subr.mxu0 0.0
    %88 = vmatpush1.msra.mxu0 %v68
    %89 = vmatprep.subr.mxu0 0.0
    %90 = vmatpush1.msra.mxu0 %v69
    %91 = vmatprep.subr.mxu0 0.0
    %92 = vmatpush1.msra.mxu0 %v70
    %93 = vmatprep.subr.mxu0 0.0
    %94 = vmatpush1.msra.mxu0 0.0
    %95 = vmatprep.subr.mxu0 0.0
    %96 = vmatpush1.msra.mxu0 0.0
    %97 = vmatprep.subr.mxu0 0.0
    %98 = vmatpush1.msra.mxu0 0.0
    %99 = vmatprep.subr.mxu0 0.0
    %100 = vmatpush1.msra.mxu0 0.0
    %101 = vmatprep.subr.mxu0 0.0
    %102 = vmatpush1.msra.mxu0 0.0
    %103 = vmatprep.subr.mxu0 0.0
    %104 = vmatpush1.msra.mxu0 0.0
    %105 = vmatprep.subr.mxu0 0.0
    %106 = vmatpush1.msra.mxu0 0.0
    %107 = vmatprep.subr.mxu0 0.0
    %108 = vmatpush1.msra.mxu0 0.0
    %109 = vmatprep.subr.mxu0 0.0
    %110 = vmatpush1.msra.mxu0 0.0
    %111 = vmatprep.subr.mxu0 0.0
    %112 = vmatpush1.msra.mxu0 0.0
    %113 = vmatprep.subr.mxu0 0.0
    %114 = vmatpush1.msra.mxu0 0.0
    %115 = vmatprep.subr.mxu0 0.0
    %116 = vmatpush1.msra.mxu0 0.0
    %117 = vmatprep.subr.mxu0 0.0
    %118 = vmatpush1.msra.mxu0 0.0
    %119 = vmatprep.subr.mxu0 0.0
    %120 = vmatpush1.msra.mxu0 0.0
    %121 = vmatprep.subr.mxu0 0.0
    %122 = vmatpush1.msra.mxu0 0.0
    %123 = vmatprep.subr.mxu0 0.0
    %124 = vmatpush1.msra.mxu0 0.0
    %125 = vmatprep.subr.mxu0 0.0
    %126 = vmatpush1.msra.mxu0 0.0
    %127 = vmatprep.subr.mxu0 0.0
    %128 = vmatpush1.msra.mxu0 0.0
    %129 = vmatprep.subr.mxu0 0.0
    %130 = vmatpush1.msra.mxu0 0.0
    %131 = vmatprep.subr.mxu0 0.0
    %132 = vmatpush1.msra.mxu0 0.0
    %133 = vmatprep.subr.mxu0 0.0
    %134 = vmatpush1.msra.mxu0 0.0
    %135 = vmatprep.subr.mxu0 0.0
    %136 = vmatpush1.msra.mxu0 0.0
    %137 = vmatprep.subr.mxu0 0.0
    %138 = vmatpush1.msra.mxu0 0.0
    %139 = vmatprep.subr.mxu0 0.0
    %140 = vmatpush1.msra.mxu0 0.0
    %141 = vmatprep.subr.mxu0 0.0
    %142 = vmatpush1.msra.mxu0 0.0
    %143 = vmatprep.subr.mxu0 0.0
    %144 = vmatpush1.msra.mxu0 0.0
    %145 = vmatprep.subr.mxu0 0.0
    %146 = vmatpush1.msra.mxu0 0.0
    %147 = vmatprep.subr.mxu0 0.0
    %148 = vmatpush1.msra.mxu0 0.0
    %149 = vmatprep.mubr.f32.mxu0 0.0
    %150 = vmatmul.mubr.f32.gmra.mrb[0].mxu0 %v80
    %v151 = vpop.f32.mrb[0].mxu0
    %v152 = vadd.f32 %v76, %v151
    %v153 = vpop.f32.mrb[0].mxu0
    %154 = vmatprep.mubr.f32.mxu0 0.0
    %155 = vmatmul.mubr.f32.gmra.mrb[0].mxu0 %v83
    %v156 = vpop.f32.mrb[0].mxu0
    %v157 = vadd.f32 %v76, %v156
    %v158 = vpop.f32.mrb[0].mxu0
    %159 = vdwg.mxu0
    %v160 = vmax.f32 %v152, 0.0
    %v161 = vmax.f32 %v157, 0.0
    %s162 = smul.u32 0, 16
    %s163 = scalar_lea.vmem [#allocation2], %s162
    %164 = vst [vmem:[%s163] sm:$0xff] %v160
    %165 = vst [vmem:[%s163 + $0x8] sm:$0xff] %v161
  $region25: #{mlp_pallas.1} parent=0 // pred_fallthru
    _
  %p166 = scmp.eq.s32.totalorder 0, 0
  // Predicated region
  $region26: #{mlp_pallas.1} parent=0 // pred_check
    %p167 = pneg %p166
  $region27: #{mlp_pallas.1} parent=0 // pred_check_branch
    %169 = sbr.rel (%p167) target = $region29
  $region28: #{mlp_pallas.1} parent=0 // pred_region
    %170 = vst [vmem:[#allocation3] sm:$0xff] 0.0
    %171 = vst [vmem:[#allocation3 + $0x8] sm:$0xff] 0.0
  $region29: #{mlp_pallas.1} parent=0 // pred_fallthru
    _
  %v172 = vld [vmem:[#allocation3] sm:$0xff]
  %v173 = vld [vmem:[#allocation3 + $0x8] sm:$0xff]
  %s174 = smul.u32 0, 16
  %s175 = scalar_lea.vmem [#allocation2], %s174
  %v176 = vld [vmem:[%s175] sm:$0xff]
  %v177 = vld [vmem:[%s175 + $0x8] sm:$0xff]
  %v178 = vld [vmem:[%s3] sm:$0xff]
  %v179 = vld [vmem:[%s3 + $0x8] sm:$0xff]
  %v180 = vld [vmem:[%s3 + $0x10] sm:$0xff]
  %v181 = vld [vmem:[%s3 + $0x18] sm:$0xff]
  %v182 = vld [vmem:[%s3 + $0x20] sm:$0xff]
  %v183 = vld [vmem:[%s3 + $0x28] sm:$0xff]
  %v184 = vld [vmem:[%s3 + $0x30] sm:$0xff]
  %v185 = vld [vmem:[%s3 + $0x38] sm:$0xff]
  %v186 = vld [vmem:[%s3 + $0x40] sm:$0xff]
  %v187 = vld [vmem:[%s3 + $0x48] sm:$0xff]
  %v188 = vld [vmem:[%s3 + $0x50] sm:$0xff]
  %v189 = vld [vmem:[%s3 + $0x58] sm:$0xff]
  %v190 = vld [vmem:[%s3 + $0x60] sm:$0xff]
  %v191 = vld [vmem:[%s3 + $0x68] sm:$0xff]
  %v192 = vld [vmem:[%s3 + $0x70] sm:$0xff]
  %v193 = vld [vmem:[%s3 + $0x78] sm:$0xff]
  %194 = vmatprep.subr.mxu0 0.0
  %195 = vmatpush1.msra.mxu0 %v178
  %196 = vmatprep.subr.mxu0 0.0
  %197 = vmatpush1.msra.mxu0 %v179
  %198 = vmatprep.subr.mxu0 0.0
  %199 = vmatpush1.msra.mxu0 %v180
  %200 = vmatprep.subr.mxu0 0.0
  %201 = vmatpush1.msra.mxu0 %v181
  %202 = vmatprep.subr.mxu0 0.0
  %203 = vmatpush1.msra.mxu0 %v182
  %204 = vmatprep.subr.mxu0 0.0
  %205 = vmatpush1.msra.mxu0 %v183
  %206 = vmatprep.subr.mxu0 0.0
  %207 = vmatpush1.msra.mxu0 %v184
  %208 = vmatprep.subr.mxu0 0.0
  %209 = vmatpush1.msra.mxu0 %v185
  %210 = vmatprep.subr.mxu0 0.0
  %211 = vmatpush1.msra.mxu0 %v186
  %212 = vmatprep.subr.mxu0 0.0
  %213 = vmatpush1.msra.mxu0 %v187
  %214 = vmatprep.subr.mxu0 0.0
  %215 = vmatpush1.msra.mxu0 %v188
  %216 = vmatprep.subr.mxu0 0.0
  %217 = vmatpush1.msra.mxu0 %v189
  %218 = vmatprep.subr.mxu0 0.0
  %219 = vmatpush1.msra.mxu0 %v190
  %220 = vmatprep.subr.mxu0 0.0
  %221 = vmatpush1.msra.mxu0 %v191
  %222 = vmatprep.subr.mxu0 0.0
  %223 = vmatpush1.msra.mxu0 %v192
  %224 = vmatprep.subr.mxu0 0.0
  %225 = vmatpush1.msra.mxu0 %v193
  %226 = vmatprep.subr.mxu0 0.0
  %227 = vmatpush1.msra.mxu0 0.0
  %228 = vmatprep.subr.mxu0 0.0
  %229 = vmatpush1.msra.mxu0 0.0
  %230 = vmatprep.subr.mxu0 0.0
  %231 = vmatpush1.msra.mxu0 0.0
  %232 = vmatprep.subr.mxu0 0.0
  %233 = vmatpush1.msra.mxu0 0.0
  %234 = vmatprep.subr.mxu0 0.0
  %235 = vmatpush1.msra.mxu0 0.0
  %236 = vmatprep.subr.mxu0 0.0
  %237 = vmatpush1.msra.mxu0 0.0
  %238 = vmatprep.subr.mxu0 0.0
  %239 = vmatpush1.msra.mxu0 0.0
  %240 = vmatprep.subr.mxu0 0.0
  %241 = vmatpush1.msra.mxu0 0.0
  %242 = vmatprep.subr.mxu0 0.0
  %243 = vmatpush1.msra.mxu0 0.0
  %244 = vmatprep.subr.mxu0 0.0
  %245 = vmatpush1.msra.mxu0 0.0
  %246 = vmatprep.subr.mxu0 0.0
  %247 = vmatpush1.msra.mxu0 0.0
  %248 = vmatprep.subr.mxu0 0.0
  %249 = vmatpush1.msra.mxu0 0.0
  %250 = vmatprep.subr.mxu0 0.0
  %251 = vmatpush1.msra.mxu0 0.0
  %252 = vmatprep.subr.mxu0 0.0
  %253 = vmatpush1.msra.mxu0 0.0
  %254 = vmatprep.subr.mxu0 0.0
  %255 = vmatpush1.msra.mxu0 0.0
  %256 = vmatprep.subr.mxu0 0.0
  %257 = vmatpush1.msra.mxu0 0.0
  %258 = vmatprep.mubr.f32.mxu0 0.0
  %259 = vmatmul.mubr.f32.gmra.mrb[0].mxu0 %v176
  %v260 = vpop.f32.mrb[0].mxu0
  %v261 = vadd.f32 0.0, %v260
  %v262 = vpop.f32.mrb[0].mxu0
  %263 = vmatprep.mubr.f32.mxu0 0.0
  %264 = vmatmul.mubr.f32.gmra.mrb[0].mxu0 %v177
  %v265 = vpop.f32.mrb[0].mxu0
  %v266 = vadd.f32 0.0, %v265
  %v267 = vpop.f32.mrb[0].mxu0
  %268 = vdwg.mxu0
  %v269 = vadd.f32 %v172, %v261
  %v270 = vadd.f32 %v173, %v266
  %271 = vst [vmem:[#allocation3] sm:$0xff] %v269
  %272 = vst [vmem:[#allocation3 + $0x8] sm:$0xff] %v270
  // Predicated region
  $region30: #{mlp_pallas.1} parent=0 // pred_check
    %p273 = pneg %p166
  $region31: #{mlp_pallas.1} parent=0 // pred_check_branch
    %275 = sbr.rel (%p273) target = $region33
  $region32: #{mlp_pallas.1} parent=0 // pred_region
    %v276 = vld [vmem:[#allocation3] sm:$0xff]
    %v277 = vld [vmem:[#allocation3 + $0x8] sm:$0xff]
    %v278 = vld [vmem:[%s4] sm:$0x1]
    %v280 = vlaneseq
    %v281 = vshrl.u32 %v280, 7
    %v282 = vsub.s32 0, %v281
    %v283 = vrot.slane %v278, %v282
    %v285 = vadd.f32 %v276, %v283
    %v286 = vadd.f32 %v277, %v283
    %287 = vst [vmem:[%s5] sm:$0xff] %v285
    %288 = vst [vmem:[%s5 + $0x8] sm:$0xff] %v286
  $region33: #{mlp_pallas.1} parent=0 // pred_fallthru
    _
  // Predicated region
  $region34: #{mlp_pallas.1} parent=0 // pred_check
    _
  $region35: #{mlp_pallas.1} parent=0 // pred_check_branch
    %290 = sbr.rel (0) target = $region37
  $region36: #{mlp_pallas.1} parent=0 // pred_region
    _
  $region37: #{mlp_pallas.1} parent=0 // pred_fallthru
    _
  // Predicated region
  $region38: #{mlp_pallas.1} parent=0 // pred_check
    _
  $region39: #{mlp_pallas.1} parent=0 // pred_check_branch
    %292 = sbr.rel (0) target = $region41
  $region40: #{mlp_pallas.1} parent=0 // pred_region
    _
  $region41: #{mlp_pallas.1} parent=0 // pred_fallthru
    _

</llo_original>
